<compile_context>
chip_gen: v7x
topology: tpu7x:2x2x1
jax: 0.10.0
libtpu: 0.0.40
codegen_flags: <defaults>
</compile_context>

<pallas_src>
import functools

import jax
import jax.numpy as jnp
from jax.experimental import pallas as pl
from jax.experimental.pallas import tpu as pltpu

LANE = 128


def _round_up(x, m):
    return (x + m - 1) // m * m


def _default_elementwise_dtype():
    """bf16 bias/ReLU on v6e/v7x (bf16 VALU); f32 on v5e and older (no bf16 VPU)."""
    try:
        kind = jax.devices()[0].device_kind.lower()
    except Exception:
        return jnp.float32
    if any(v in kind for v in ("v2", "v3", "v4", "v5")):
        return jnp.float32
    return jnp.bfloat16


def _make_dqn_kernel(ew_dtype):
    def dqn_kernel(x_ref, w1_ref, b1_ref, w2_ref, b2_ref, w3_ref, b3_ref, o_ref):
        # x tile: bf16 (b_tile, k1p); w*: bf16; b1/b2: ew_dtype; b3: f32.
        # Layer 1: Linear(n_obs, 256) + ReLU (f32 MXU accumulate, ew_dtype elementwise).
        h1 = jnp.dot(x_ref[...], w1_ref[...], preferred_element_type=jnp.float32)
        h1 = jnp.maximum(h1.astype(ew_dtype) + b1_ref[...], 0).astype(jnp.bfloat16)
        # Layer 2: Linear(256, 256) + ReLU.
        h2 = jnp.dot(h1, w2_ref[...], preferred_element_type=jnp.float32)
        h2 = jnp.maximum(h2.astype(ew_dtype) + b2_ref[...], 0).astype(jnp.bfloat16)
        # Layer 3: Linear(256, n_actions); lane-dense (padded-to-128) f32 store.
        out = jnp.dot(h2, w3_ref[...], preferred_element_type=jnp.float32) + b3_ref[...]
        o_ref[...] = out.astype(o_ref.dtype)

    return dqn_kernel


def prepare_dqn_params(w1, b1, w2, b2, w3, b3, ew_dtype=None):
    """One-time weight prep: pad + cast to kernel layout. Reuse the result every call.

    w1:(n_obs,256), w2:(256,256), w3:(256,n_actions) f32; b*: (1,out) f32.
    Returns (params_tuple, ew_dtype).
    """
    if ew_dtype is None:
        ew_dtype = _default_elementwise_dtype()
    n_obs, hidden = w1.shape
    n_actions = w3.shape[1]

    k1p = _round_up(n_obs, 16)            # bf16 sublane packing; NOT padded to 128
    n_out_p = _round_up(n_actions, LANE)  # lane-dense output store

    w1_p = jnp.zeros((k1p, hidden), jnp.bfloat16).at[:n_obs, :].set(
        w1.astype(jnp.bfloat16))
    w2_p = w2.astype(jnp.bfloat16)
    w3_p = jnp.zeros((hidden, n_out_p), jnp.bfloat16).at[:, :n_actions].set(
        w3.astype(jnp.bfloat16))
    b1_p = b1.astype(ew_dtype)
    b2_p = b2.astype(ew_dtype)
    b3_p = jnp.zeros((1, n_out_p), jnp.float32).at[:, :n_actions].set(b3)
    return (w1_p, b1_p, w2_p, b2_p, w3_p, b3_p), ew_dtype


def dqn_forward(x, params, *, n_actions, ew_dtype):
    """x:(B,n_obs) f32; params from prepare_dqn_params. Returns (B,n_actions) f32."""
    w1_p, b1_p, w2_p, b2_p, w3_p, b3_p = params
    B, n_obs = x.shape
    k1p, hidden = w1_p.shape
    n_out_p = w3_p.shape[1]

    # Batch tiling: 256-row tiles fill the 256-wide v6e/v7x MXU and amortize the
    # ~0.35us per-grid-step overhead (two pushes on v5e's 128-wide MXU). Small
    # batches use one 16-row-aligned tile (bf16 sublane packing).
    if B >= 256:
        b_tile = 256
    elif B >= 128:
        b_tile = 128
    else:
        b_tile = _round_up(max(B, 1), 16)
    bp = _round_up(B, b_tile)

    # Pad + cast x to bf16 in one op (the only per-call data prep left).
    x_p = jnp.zeros((bp, k1p), jnp.bfloat16).at[:B, :n_obs].set(x.astype(jnp.bfloat16))

    # Weights/biases: constant block index -> DMA'd once, resident across grid steps.
    # (pl.Buffered(1) single-buffering of these blocks is a further ~260 KiB VMEM
    # hygiene win; skipped here to keep the call maximally portable.)
    resident = lambda shape: pl.BlockSpec(shape, lambda i: (0, 0))

    out_p = pl.pallas_call(
        _make_dqn_kernel(ew_dtype),
        out_shape=jax.ShapeDtypeStruct((bp, n_out_p), jnp.float32),
        grid=(bp // b_tile,),
        in_specs=[
            pl.BlockSpec((b_tile, k1p), lambda i: (i, 0)),  # x: tiled over batch
            resident((k1p, hidden)),      # w1
            resident((1, hidden)),        # b1
            resident((hidden, hidden)),   # w2
            resident((1, hidden)),        # b2
            resident((hidden, n_out_p)),  # w3 (output dim padded to 128)
            resident((1, n_out_p)),       # b3
        ],
        out_specs=pl.BlockSpec((b_tile, n_out_p), lambda i: (i, 0)),
        compiler_params=pltpu.CompilerParams(
            # Batch axis sharded across v7x's 2 TCs when the grid has >1 step; for
            # tiny batches the grid is 1 step and the second core stays idle (the
            # kernel is weight-DMA bound there anyway).
            dimension_semantics=("parallel",),
            vmem_limit_bytes=16 << 20,
        ),
    )(x_p, w1_p, b1_p, w2_p, b2_p, w3_p, b3_p)

    # TODO(synk): for per-RL-step inference with fixed weights, a cross-call weight
    # prefetch (P10: start weight DMA in a prior pallas_call, return (sem, VMEM ref))
    # would hide the remaining ~200 KiB weight DMA behind the previous step.
    return out_p[:B, :n_actions]


def init_linear(key, fan_in, fan_out):
    # PyTorch default nn.Linear init: U(-1/sqrt(fan_in), 1/sqrt(fan_in)) for W and b.
    kw, kb = jax.random.split(key)
    bound = 1.0 / jnp.sqrt(float(fan_in))
    w = jax.random.uniform(kw, (fan_in, fan_out), jnp.float32, -bound, bound)
    b = jax.random.uniform(kb, (1, fan_out), jnp.float32, -bound, bound)
    return w, b


if __name__ == "__main__":
    n_observations = 32
    n_actions = 8
    hidden = 256
    batch = 8

    key = jax.random.PRNGKey(0)
    kx, k1, k2, k3 = jax.random.split(key, 4)

    x = jax.random.normal(kx, (batch, n_observations), jnp.float32)
    w1, b1 = init_linear(k1, n_observations, hidden)
    w2, b2 = init_linear(k2, hidden, hidden)
    w3, b3 = init_linear(k3, hidden, n_actions)

    # One-time weight prep (hoisted out of the per-call path), then a jitted forward
    # that only pads/casts x and runs the fused kernel.
    params, ew_dtype = prepare_dqn_params(w1, b1, w2, b2, w3, b3)
    params = jax.tree_util.tree_map(jax.block_until_ready, params)
    fwd = jax.jit(functools.partial(dqn_forward, n_actions=n_actions, ew_dtype=ew_dtype))

    out = jax.block_until_ready(fwd(x, params))

    # Reference mirroring the kernel's bf16-weight / f32-accumulate / ew_dtype-elementwise
    # semantics, plus the exact f32 PyTorch-equivalent reference.
    def ref_bf16_forward(x, w1, b1, w2, b2, w3, b3):
        d = lambda a, b: jnp.dot(a.astype(jnp.bfloat16), b.astype(jnp.bfloat16),
                                 preferred_element_type=jnp.float32)
        h1 = jnp.maximum(d(x, w1).astype(ew_dtype) + b1.astype(ew_dtype), 0)
        h2 = jnp.maximum(d(h1, w2).astype(ew_dtype) + b2.astype(ew_dtype), 0)
        return d(h2, w3) + b3

    ref_bf16 = ref_bf16_forward(x, w1, b1, w2, b2, w3, b3)
    ref_f32 = jnp.maximum(jnp.maximum(x @ w1 + b1, 0.0) @ w2 + b2, 0.0) @ w3 + b3

    assert out.shape == (batch, n_actions)
    assert out.dtype == jnp.float32
    assert jnp.allclose(out, ref_bf16, atol=2e-2, rtol=2e-2)
    assert jnp.allclose(out, ref_f32, atol=5e-2, rtol=5e-2)

    print("KERNEL_OK")
</pallas_src>

<mosaic_0001>
module attributes {stable_mosaic.version = 11 : i64} {
  func.func @dqn_kernel(%arg0: i32, %arg1: memref<16x32xbf16, #tpu.memory_space<vmem>>, %arg2: memref<32x256xbf16, #tpu.memory_space<vmem>>, %arg3: memref<1x256xbf16, #tpu.memory_space<vmem>>, %arg4: memref<256x256xbf16, #tpu.memory_space<vmem>>, %arg5: memref<1x256xbf16, #tpu.memory_space<vmem>>, %arg6: memref<256x128xbf16, #tpu.memory_space<vmem>>, %arg7: memref<1x128xf32, #tpu.memory_space<vmem>>, %arg8: memref<16x128xf32, #tpu.memory_space<vmem>>) attributes {dimension_semantics = [#tpu.dimension_semantics<parallel>], iteration_bounds = array<i64: 1>, scalar_prefetch = 0 : i64, scratch_operands = 0 : i64, tpu.core_type = #tpu.core_type<tc>, window_params = [{transform_indices = @transform_0, window_bounds = array<i64: 16, 32>}, {pipeline_mode = #tpu.pipeline_mode<synchronous>, transform_indices = @transform_1, window_bounds = array<i64: 32, 256>}, {pipeline_mode = #tpu.pipeline_mode<synchronous>, transform_indices = @transform_2, window_bounds = array<i64: 1, 256>}, {pipeline_mode = #tpu.pipeline_mode<synchronous>, transform_indices = @transform_3, window_bounds = array<i64: 256, 256>}, {pipeline_mode = #tpu.pipeline_mode<synchronous>, transform_indices = @transform_4, window_bounds = array<i64: 1, 256>}, {pipeline_mode = #tpu.pipeline_mode<synchronous>, transform_indices = @transform_5, window_bounds = array<i64: 256, 128>}, {pipeline_mode = #tpu.pipeline_mode<synchronous>, transform_indices = @transform_6, window_bounds = array<i64: 1, 128>}, {transform_indices = @transform_7, window_bounds = array<i64: 16, 128>}]} {
    %c0 = arith.constant 0 : index
    %c0_0 = arith.constant 0 : index
    %0 = vector.load %arg1[%c0, %c0_0] : memref<16x32xbf16, #tpu.memory_space<vmem>>, vector<16x32xbf16>
    %c0_1 = arith.constant 0 : index
    %c0_2 = arith.constant 0 : index
    %1 = vector.load %arg2[%c0_1, %c0_2] : memref<32x256xbf16, #tpu.memory_space<vmem>>, vector<32x256xbf16>
    %cst = arith.constant dense<0.000000e+00> : vector<16x256xf32>
    %2 = tpu.matmul %0, %1, %cst {dimension_numbers = #tpu.dot_dimension_numbers<[1], [0], [0], [1], [0, 0, 1, 1], [], []>} : vector<16x32xbf16>, vector<32x256xbf16>, vector<16x256xf32> -> vector<16x256xf32>
    %3 = arith.truncf %2 : vector<16x256xf32> to vector<16x256xbf16>
    %c0_3 = arith.constant 0 : index
    %c0_4 = arith.constant 0 : index
    %4 = vector.load %arg3[%c0_3, %c0_4] : memref<1x256xbf16, #tpu.memory_space<vmem>>, vector<1x256xbf16>
    %5 = vector.broadcast %4 : vector<1x256xbf16> to vector<16x256xbf16>
    %6 = arith.addf %3, %5 : vector<16x256xbf16>
    %cst_5 = arith.constant 0.000000e+00 : bf16
    %7 = vector.broadcast %cst_5 : bf16 to vector<16x256xbf16>
    %8 = arith.maximumf %6, %7 : vector<16x256xbf16>
    %c0_6 = arith.constant 0 : index
    %c0_7 = arith.constant 0 : index
    %9 = vector.load %arg4[%c0_6, %c0_7] : memref<256x256xbf16, #tpu.memory_space<vmem>>, vector<256x256xbf16>
    %cst_8 = arith.constant dense<0.000000e+00> : vector<16x256xf32>
    %10 = tpu.matmul %8, %9, %cst_8 {dimension_numbers = #tpu.dot_dimension_numbers<[1], [0], [0], [1], [0, 0, 1, 1], [], []>} : vector<16x256xbf16>, vector<256x256xbf16>, vector<16x256xf32> -> vector<16x256xf32>
    %11 = arith.truncf %10 : vector<16x256xf32> to vector<16x256xbf16>
    %c0_9 = arith.constant 0 : index
    %c0_10 = arith.constant 0 : index
    %12 = vector.load %arg5[%c0_9, %c0_10] : memref<1x256xbf16, #tpu.memory_space<vmem>>, vector<1x256xbf16>
    %13 = vector.broadcast %12 : vector<1x256xbf16> to vector<16x256xbf16>
    %14 = arith.addf %11, %13 : vector<16x256xbf16>
    %cst_11 = arith.constant 0.000000e+00 : bf16
    %15 = vector.broadcast %cst_11 : bf16 to vector<16x256xbf16>
    %16 = arith.maximumf %14, %15 : vector<16x256xbf16>
    %c0_12 = arith.constant 0 : index
    %c0_13 = arith.constant 0 : index
    %17 = vector.load %arg6[%c0_12, %c0_13] : memref<256x128xbf16, #tpu.memory_space<vmem>>, vector<256x128xbf16>
    %cst_14 = arith.constant dense<0.000000e+00> : vector<16x128xf32>
    %18 = tpu.matmul %16, %17, %cst_14 {dimension_numbers = #tpu.dot_dimension_numbers<[1], [0], [0], [1], [0, 0, 1, 1], [], []>} : vector<16x256xbf16>, vector<256x128xbf16>, vector<16x128xf32> -> vector<16x128xf32>
    %c0_15 = arith.constant 0 : index
    %c0_16 = arith.constant 0 : index
    %19 = vector.load %arg7[%c0_15, %c0_16] : memref<1x128xf32, #tpu.memory_space<vmem>>, vector<1x128xf32>
    %20 = vector.broadcast %19 : vector<1x128xf32> to vector<16x128xf32>
    %21 = arith.addf %18, %20 : vector<16x128xf32>
    %c0_17 = arith.constant 0 : index
    %c0_18 = arith.constant 0 : index
    %22 = vector.load %arg8[%c0_17, %c0_18] : memref<16x128xf32, #tpu.memory_space<vmem>>, vector<16x128xf32>
    tpu.vector_store %arg8[%c0_17, %c0_18], %21 {strides = array<i32>} : memref<16x128xf32, #tpu.memory_space<vmem>>, vector<16x128xf32>,
    return
  }
  func.func @transform_0(%arg0: i32) -> (i32, i32) {
    %c0_i32 = arith.constant 0 : i32
    %c0_i32_0 = arith.constant 0 : i32
    return %arg0, %c0_i32 : i32, i32
  }
  func.func @transform_1(%arg0: i32) -> (i32, i32) {
    %c0_i32 = arith.constant 0 : i32
    %c0_i32_0 = arith.constant 0 : i32
    %c0_i32_1 = arith.constant 0 : i32
    return %c0_i32, %c0_i32_0 : i32, i32
  }
  func.func @transform_2(%arg0: i32) -> (i32, i32) {
    %c0_i32 = arith.constant 0 : i32
    %c0_i32_0 = arith.constant 0 : i32
    %c0_i32_1 = arith.constant 0 : i32
    return %c0_i32, %c0_i32_0 : i32, i32
  }
  func.func @transform_3(%arg0: i32) -> (i32, i32) {
    %c0_i32 = arith.constant 0 : i32
    %c0_i32_0 = arith.constant 0 : i32
    %c0_i32_1 = arith.constant 0 : i32
    return %c0_i32, %c0_i32_0 : i32, i32
  }
  func.func @transform_4(%arg0: i32) -> (i32, i32) {
    %c0_i32 = arith.constant 0 : i32
    %c0_i32_0 = arith.constant 0 : i32
    %c0_i32_1 = arith.constant 0 : i32
    return %c0_i32, %c0_i32_0 : i32, i32
  }
  func.func @transform_5(%arg0: i32) -> (i32, i32) {
    %c0_i32 = arith.constant 0 : i32
    %c0_i32_0 = arith.constant 0 : i32
    %c0_i32_1 = arith.constant 0 : i32
    return %c0_i32, %c0_i32_0 : i32, i32
  }
  func.func @transform_6(%arg0: i32) -> (i32, i32) {
    %c0_i32 = arith.constant 0 : i32
    %c0_i32_0 = arith.constant 0 : i32
    %c0_i32_1 = arith.constant 0 : i32
    return %c0_i32, %c0_i32_0 : i32, i32
  }
  func.func @transform_7(%arg0: i32) -> (i32, i32) {
    %c0_i32 = arith.constant 0 : i32
    %c0_i32_0 = arith.constant 0 : i32
    return %arg0, %c0_i32 : i32, i32
  }
}

</mosaic_0001>

<llo_original>
// kernel: dqn_forward.1
$region0: #{dqn_forward.1}
  #allocation0 [shape = 'u32[]', space=smem, size = 0x4, offset = 0x4, fixed_abs, tag = 'smem constant byte address 0x4 - core index']
  #allocation1 [shape = 'u32[144,128]{1,0:T(1,128)}', space=vmem, size = 0x12000, scoped, tag = 'internal scratch']
  %s0 = inlined_call_operand.vmem [shape: bf16[16,32], index: 0, kind: input, shape index: {}]
  %s1 = inlined_call_operand.hbm [shape: bf16[32,256], index: 1, kind: input, shape index: {}]
  %s2 = inlined_call_operand.vmem [shape: bf16[1,256], index: 2, kind: input, shape index: {}]
  %s3 = inlined_call_operand.hbm [shape: bf16[256,256], index: 3, kind: input, shape index: {}]
  %s4 = inlined_call_operand.vmem [shape: bf16[1,256], index: 4, kind: input, shape index: {}]
  %s5 = inlined_call_operand.hbm [shape: bf16[256,128], index: 5, kind: input, shape index: {}]
  %s6 = inlined_call_operand.vmem [shape: f32[1,128], index: 6, kind: input, shape index: {}]
  %s7 = inlined_call_operand.vmem [shape: f32[16,128], index: 7, kind: output, shape index: {}]
  %s8 = sld [smem:[#allocation0]]
  $region50: #{dqn_forward.1} parent=0
    _
  %s10 = ssub.s32 1, %s8
  %s11 = scalar_select 0, %s10, %s8
  $region1: #{dqn_forward.1} parent=0
    #allocation2 [shape = 'u8[16384]{0}', space=vmem, size = 0x4000, scoped, tag = 'input window, operand 1, single buffered']
    #allocation3 [shape = 's32[1]{0}', space=sflag, size = 0x4, scoped, tag = 'scoped memory for dqn_forward.1']
    #allocation4 [shape = 'u8[131072]{0}', space=vmem, size = 0x20000, scoped, tag = 'input window, operand 3, single buffered']
    #allocation5 [shape = 's32[1]{0}', space=sflag, size = 0x4, scoped, tag = 'scoped memory for dqn_forward.1']
    #allocation6 [shape = 'u8[65536]{0}', space=vmem, size = 0x10000, scoped, tag = 'input window, operand 5, single buffered']
    %12 = vsyncpa [#allocation3], 0
    %13 = vsyncpa [#allocation5], 0
    // Predicated region
    $region2: #{dqn_forward.1} parent=1 // pred_check
      _
    $region3: #{dqn_forward.1} parent=1 // pred_check_branch
      %15 = sbr.rel (0) target = $region5
    $region4: #{dqn_forward.1} parent=1 // pred_region
      _
    $region5: #{dqn_forward.1} parent=1 // pred_fallthru
      _
    // Predicated region
    $region6: #{dqn_forward.1} parent=1 // pred_check
      _
    $region7: #{dqn_forward.1} parent=1 // pred_check_branch
      %17 = sbr.rel (0) target = $region9
    $region8: #{dqn_forward.1} parent=1 // pred_region
      %s19 = ssub.s32 512, 512
      %20 = vsyncadd [#allocation3], %s19
      %s21 = sshll.u32 [#allocation2], 4
      %s22 = int_to_ptr.vmem [resolvable:$true] %s21
      %27 = dma.hbm_to_vmem [thread:$0]  %s1, 512, %s22, [#allocation3], 128, 128, 8
    $region9: #{dqn_forward.1} parent=1 // pred_fallthru
      _
    // Predicated region
    $region10: #{dqn_forward.1} parent=1 // pred_check
      _
    $region11: #{dqn_forward.1} parent=1 // pred_check_branch
      %29 = sbr.rel (0) target = $region13
    $region12: #{dqn_forward.1} parent=1 // pred_region
      _
    $region13: #{dqn_forward.1} parent=1 // pred_fallthru
      _
    // Predicated region
    $region14: #{dqn_forward.1} parent=1 // pred_check
      _
    $region15: #{dqn_forward.1} parent=1 // pred_check_branch
      %31 = sbr.rel (0) target = $region17
    $region16: #{dqn_forward.1} parent=1 // pred_region
      %s33 = ssub.s32 4096, 4096
      %34 = vsyncadd [#allocation5], %s33
      %s35 = sshll.u32 [#allocation4], 4
      %s36 = int_to_ptr.vmem [resolvable:$true] %s35
      %41 = dma.hbm_to_vmem [thread:$0]  %s3, 4096, %s36, [#allocation5], 128, 128, 8
    $region17: #{dqn_forward.1} parent=1 // pred_fallthru
      _
    // Predicated region
    $region18: #{dqn_forward.1} parent=1 // pred_check
      _
    $region19: #{dqn_forward.1} parent=1 // pred_check_branch
      %43 = sbr.rel (0) target = $region21
    $region20: #{dqn_forward.1} parent=1 // pred_region
      _
    $region21: #{dqn_forward.1} parent=1 // pred_fallthru
      _
    // Predicated region
    $region22: #{dqn_forward.1} parent=1 // pred_check
      _
    $region23: #{dqn_forward.1} parent=1 // pred_check_branch
      %45 = sbr.rel (0) target = $region25
    $region24: #{dqn_forward.1} parent=1 // pred_region
      %s47 = ssub.s32 2048, 2048
      %48 = vsyncadd [#allocation5], %s47
      %s49 = sshll.u32 [#allocation6], 4
      %s50 = int_to_ptr.vmem [resolvable:$true] %s49
      %55 = dma.hbm_to_vmem [thread:$0]  %s5, 2048, %s50, [#allocation5], 64, 64, 4
    $region25: #{dqn_forward.1} parent=1 // pred_fallthru
      _
    // Predicated region
    $region26: #{dqn_forward.1} parent=1 // pred_check
      _
    $region27: #{dqn_forward.1} parent=1 // pred_check_branch
      %57 = sbr.rel (0) target = $region29
    $region28: #{dqn_forward.1} parent=1 // pred_region
      _
    $region29: #{dqn_forward.1} parent=1 // pred_fallthru
      _
    // Predicated region
    $region30: #{dqn_forward.1} parent=1 // pred_check
      _
    $region31: #{dqn_forward.1} parent=1 // pred_check_branch
      %59 = sbr.rel (0) target = $region33
    $region32: #{dqn_forward.1} parent=1 // pred_region
      %60 = dma.done [#allocation3], 512
    $region33: #{dqn_forward.1} parent=1 // pred_fallthru
      _
    // Predicated region
    $region34: #{dqn_forward.1} parent=1 // pred_check
      _
    $region35: #{dqn_forward.1} parent=1 // pred_check_branch
      %62 = sbr.rel (0) target = $region37
    $region36: #{dqn_forward.1} parent=1 // pred_region
      %63 = dma.done [#allocation5], 4096
    $region37: #{dqn_forward.1} parent=1 // pred_fallthru
      _
    // Predicated region
    $region38: #{dqn_forward.1} parent=1 // pred_check
      _
    $region39: #{dqn_forward.1} parent=1 // pred_check_branch
      %65 = sbr.rel (0) target = $region41
    $region40: #{dqn_forward.1} parent=1 // pred_region
      %66 = dma.done [#allocation5], 2048
    $region41: #{dqn_forward.1} parent=1 // pred_fallthru
      _
    %v68 = vld [vmem:[%s0] sm:$0xf]
    %v69 = vld [vmem:[%s0 + $0x4] sm:$0xf]
    %v70 = vld [vmem:[#allocation2] sm:$0xff]
    %v71 = vld [vmem:[#allocation2 + $0x8] sm:$0xff]
    %v72 = vld [vmem:[#allocation2 + $0x10] sm:$0xff]
    %v73 = vld [vmem:[#allocation2 + $0x18] sm:$0xff]
    %v76 = vunpack.c.l.b16 %v68
    %v77 = vunpack.c.l.b16 %v69
    %v78 = vpack.c.b16 %v77, %v76
    %v83 = vunpack.c.l.b16 %v70
    %v84 = vunpack.c.h.b16 %v70
    %v85 = vunpack.c.l.b16 %v71
    %v86 = vunpack.c.h.b16 %v71
    %v87 = vunpack.c.l.b16 %v72
    %v88 = vunpack.c.h.b16 %v72
    %v89 = vunpack.c.l.b16 %v73
    %v90 = vunpack.c.h.b16 %v73
    %v91 = vpack.c.b16 %v85, %v83
    %v92 = vpack.c.b16 %v86, %v84
    %v93 = vpack.c.b16 %v89, %v87
    %v94 = vpack.c.b16 %v90, %v88
    %vm99 = vcmask 261120
    %v101 = vsel %vm99, %v78, 0
    %103 = vmatprep.subr.bf16.mxu0 %v92
    %104 = vmatpush1.bf16.msra.mxu0 %v91
    %105 = vmatprep.subr.bf16.mxu0 %v94
    %106 = vmatpush1.bf16.msra.mxu0 %v93
    %107 = vmatprep.subr.bf16.mxu0 0
    %108 = vmatpush1.bf16.msra.mxu0 0
    %109 = vmatprep.subr.bf16.mxu0 0
    %110 = vmatpush1.bf16.msra.mxu0 0
    %111 = vmatprep.subr.bf16.mxu0 0
    %112 = vmatpush1.bf16.msra.mxu0 0
    %113 = vmatprep.subr.bf16.mxu0 0
    %114 = vmatpush1.bf16.msra.mxu0 0
    %115 = vmatprep.subr.bf16.mxu0 0
    %116 = vmatpush1.bf16.msra.mxu0 0
    %117 = vmatprep.subr.bf16.mxu0 0
    %118 = vmatpush1.bf16.msra.mxu0 0
    %119 = vmatprep.subr.bf16.mxu0 0
    %120 = vmatpush1.bf16.msra.mxu0 0
    %121 = vmatprep.subr.bf16.mxu0 0
    %122 = vmatpush1.bf16.msra.mxu0 0
    %123 = vmatprep.subr.bf16.mxu0 0
    %124 = vmatpush1.bf16.msra.mxu0 0
    %125 = vmatprep.subr.bf16.mxu0 0
    %126 = vmatpush1.bf16.msra.mxu0 0
    %127 = vmatprep.subr.bf16.mxu0 0
    %128 = vmatpush1.bf16.msra.mxu0 0
    %129 = vmatprep.subr.bf16.mxu0 0
    %130 = vmatpush1.bf16.msra.mxu0 0
    %131 = vmatprep.subr.bf16.mxu0 0
    %132 = vmatpush1.bf16.msra.mxu0 0
    %133 = vmatprep.subr.bf16.mxu0 0
    %134 = vmatpush1.bf16.msra.mxu0 0
    %135 = vmatprep.mubr.bf16.mxu0 0
    %136 = vmatmul.mubr.bf16.gmra.mrb[0].mxu0 %v101
    %v137 = vpop.f32.mrb[0].mxu0
    %v138 = vadd.f32 0.0, %v137
    %v139 = vpop.f32.mrb[0].mxu0
    %v140 = vadd.f32 0.0, %v139
    %v141 = vpop.f32.mrb[0].mxu0
    %v142 = vadd.f32 0.0, %v141
    %v143 = vpop.f32.mrb[0].mxu0
    %v144 = vadd.f32 0.0, %v143
    %145 = vdwg.mxu0
    %v146 = vpack.c.bf16 %v142, %v138
    %v147 = vpack.c.bf16 %v144, %v140
    %v148 = vld [vmem:[%s2] sm:$0x3]
    %v151 = vunpack.c.l.s4 1966171168
    %v152 = vunpack.c.0.s8 %v151
    %v153 = vlaneseq
    %v154 = vshrl.u32 %v153, 7
    %v155 = vsub.s32 %v152, %v154
    %v156 = vrot.slane %v148, %v155
    %v157 = vcombine.high %v156, %v156
    %v159 = vunpack.c.l.s4 1966171168
    %v160 = vunpack.c.0.s8 %v159
    %v161 = vlaneseq
    %v162 = vshrl.u32 %v161, 7
    %v163 = vsub.s32 %v160, %v162
    %v164 = vrot.slane %v156, %v163
    %v166 = vunpack.c.l.s4 1966171168
    %v167 = vunpack.c.0.s8 %v166
    %v168 = vlaneseq
    %v169 = vshrl.u32 %v168, 7
    %v170 = vsub.s32 %v167, %v169
    %v171 = vrot.slane %v157, %v170
    %v173 = vpack.i.b16 %v164, %v164
    %v175 = vlaneseq
    %v176 = vshrl.u32 %v175, 7
    %v177 = vsub.s32 0, %v176
    %v178 = vrot.slane %v173, %v177
    %v180 = vpack.i.b16 %v171, %v171
    %v182 = vlaneseq
    %v183 = vshrl.u32 %v182, 7
    %v184 = vsub.s32 0, %v183
    %v185 = vrot.slane %v180, %v184
    %v186 = vadd.bf16 %v146, %v178
    %v187 = vadd.bf16 %v147, %v185
    %v188 = vmax.bf16 %v186, 0
    %v189 = vmax.bf16 %v187, 0
    %v190 = vld [vmem:[#allocation4] sm:$0xff]
    %v191 = vld [vmem:[#allocation4 + $0x8] sm:$0xff]
    %v192 = vld [vmem:[#allocation4 + $0x10] sm:$0xff]
    %v193 = vld [vmem:[#allocation4 + $0x18] sm:$0xff]
    %v194 = vld [vmem:[#allocation4 + $0x20] sm:$0xff]
    %v195 = vld [vmem:[#allocation4 + $0x28] sm:$0xff]
    %v196 = vld [vmem:[#allocation4 + $0x30] sm:$0xff]
    %v197 = vld [vmem:[#allocation4 + $0x38] sm:$0xff]
    %v198 = vld [vmem:[#allocation4 + $0x40] sm:$0xff]
    %v199 = vld [vmem:[#allocation4 + $0x48] sm:$0xff]
    %v200 = vld [vmem:[#allocation4 + $0x50] sm:$0xff]
    %v201 = vld [vmem:[#allocation4 + $0x58] sm:$0xff]
    %v202 = vld [vmem:[#allocation4 + $0x60] sm:$0xff]
    %v203 = vld [vmem:[#allocation4 + $0x68] sm:$0xff]
    %v204 = vld [vmem:[#allocation4 + $0x70] sm:$0xff]
    %v205 = vld [vmem:[#allocation4 + $0x78] sm:$0xff]
    %v206 = vld [vmem:[#allocation4 + $0x80] sm:$0xff]
    %v207 = vld [vmem:[#allocation4 + $0x88] sm:$0xff]
    %v208 = vld [vmem:[#allocation4 + $0x90] sm:$0xff]
    %v209 = vld [vmem:[#allocation4 + $0x98] sm:$0xff]
    %v210 = vld [vmem:[#allocation4 + $0xa0] sm:$0xff]
    %v211 = vld [vmem:[#allocation4 + $0xa8] sm:$0xff]
    %v212 = vld [vmem:[#allocation4 + $0xb0] sm:$0xff]
    %v213 = vld [vmem:[#allocation4 + $0xb8] sm:$0xff]
    %v214 = vld [vmem:[#allocation4 + $0xc0] sm:$0xff]
    %v215 = vld [vmem:[#allocation4 + $0xc8] sm:$0xff]
    %v216 = vld [vmem:[#allocation4 + $0xd0] sm:$0xff]
    %v217 = vld [vmem:[#allocation4 + $0xd8] sm:$0xff]
    %v218 = vld [vmem:[#allocation4 + $0xe0] sm:$0xff]
    %v219 = vld [vmem:[#allocation4 + $0xe8] sm:$0xff]
    %v220 = vld [vmem:[#allocation4 + $0xf0] sm:$0xff]
    %v221 = vld [vmem:[#allocation4 + $0xf8] sm:$0xff]
    %v254 = vunpack.c.l.b16 %v190
    %v255 = vunpack.c.h.b16 %v190
    %v256 = vunpack.c.l.b16 %v191
    %v257 = vunpack.c.h.b16 %v191
    %v258 = vunpack.c.l.b16 %v192
    %v259 = vunpack.c.h.b16 %v192
    %v260 = vunpack.c.l.b16 %v193
    %v261 = vunpack.c.h.b16 %v193
    %v262 = vunpack.c.l.b16 %v194
    %v263 = vunpack.c.h.b16 %v194
    %v264 = vunpack.c.l.b16 %v195
    %v265 = vunpack.c.h.b16 %v195
    %v266 = vunpack.c.l.b16 %v196
    %v267 = vunpack.c.h.b16 %v196
    %v268 = vunpack.c.l.b16 %v197
    %v269 = vunpack.c.h.b16 %v197
    %v270 = vunpack.c.l.b16 %v198
    %v271 = vunpack.c.h.b16 %v198
    %v272 = vunpack.c.l.b16 %v199
    %v273 = vunpack.c.h.b16 %v199
    %v274 = vunpack.c.l.b16 %v200
    %v275 = vunpack.c.h.b16 %v200
    %v276 = vunpack.c.l.b16 %v201
    %v277 = vunpack.c.h.b16 %v201
    %v278 = vunpack.c.l.b16 %v202
    %v279 = vunpack.c.h.b16 %v202
    %v280 = vunpack.c.l.b16 %v203
    %v281 = vunpack.c.h.b16 %v203
    %v282 = vunpack.c.l.b16 %v204
    %v283 = vunpack.c.h.b16 %v204
    %v284 = vunpack.c.l.b16 %v205
    %v285 = vunpack.c.h.b16 %v205
    %v286 = vunpack.c.l.b16 %v206
    %v287 = vunpack.c.h.b16 %v206
    %v288 = vunpack.c.l.b16 %v207
    %v289 = vunpack.c.h.b16 %v207
    %v290 = vunpack.c.l.b16 %v208
    %v291 = vunpack.c.h.b16 %v208
    %v292 = vunpack.c.l.b16 %v209
    %v293 = vunpack.c.h.b16 %v209
    %v294 = vunpack.c.l.b16 %v210
    %v295 = vunpack.c.h.b16 %v210
    %v296 = vunpack.c.l.b16 %v211
    %v297 = vunpack.c.h.b16 %v211
    %v298 = vunpack.c.l.b16 %v212
    %v299 = vunpack.c.h.b16 %v212
    %v300 = vunpack.c.l.b16 %v213
    %v301 = vunpack.c.h.b16 %v213
    %v302 = vunpack.c.l.b16 %v214
    %v303 = vunpack.c.h.b16 %v214
    %v304 = vunpack.c.l.b16 %v215
    %v305 = vunpack.c.h.b16 %v215
    %v306 = vunpack.c.l.b16 %v216
    %v307 = vunpack.c.h.b16 %v216
    %v308 = vunpack.c.l.b16 %v217
    %v309 = vunpack.c.h.b16 %v217
    %v310 = vunpack.c.l.b16 %v218
    %v311 = vunpack.c.h.b16 %v218
    %v312 = vunpack.c.l.b16 %v219
    %v313 = vunpack.c.h.b16 %v219
    %v314 = vunpack.c.l.b16 %v220
    %v315 = vunpack.c.h.b16 %v220
    %v316 = vunpack.c.l.b16 %v221
    %v317 = vunpack.c.h.b16 %v221
    %v318 = vpack.c.b16 %v256, %v254
    %v319 = vpack.c.b16 %v257, %v255
    %v320 = vpack.c.b16 %v260, %v258
    %v321 = vpack.c.b16 %v261, %v259
    %v322 = vpack.c.b16 %v264, %v262
    %v323 = vpack.c.b16 %v265, %v263
    %v324 = vpack.c.b16 %v268, %v266
    %v325 = vpack.c.b16 %v269, %v267
    %v326 = vpack.c.b16 %v272, %v270
    %v327 = vpack.c.b16 %v273, %v271
    %v328 = vpack.c.b16 %v276, %v274
    %v329 = vpack.c.b16 %v277, %v275
    %v330 = vpack.c.b16 %v280, %v278
    %v331 = vpack.c.b16 %v281, %v279
    %v332 = vpack.c.b16 %v284, %v282
    %v333 = vpack.c.b16 %v285, %v283
    %v334 = vpack.c.b16 %v288, %v286
    %v335 = vpack.c.b16 %v289, %v287
    %v336 = vpack.c.b16 %v292, %v290
    %v337 = vpack.c.b16 %v293, %v291
    %v338 = vpack.c.b16 %v296, %v294
    %v339 = vpack.c.b16 %v297, %v295
    %v340 = vpack.c.b16 %v300, %v298
    %v341 = vpack.c.b16 %v301, %v299
    %v342 = vpack.c.b16 %v304, %v302
    %v343 = vpack.c.b16 %v305, %v303
    %v344 = vpack.c.b16 %v308, %v306
    %v345 = vpack.c.b16 %v309, %v307
    %v346 = vpack.c.b16 %v312, %v310
    %v347 = vpack.c.b16 %v313, %v311
    %v348 = vpack.c.b16 %v316, %v314
    %v349 = vpack.c.b16 %v317, %v315
    %382 = vmatprep.subr.bf16.mxu0 %v319
    %383 = vmatpush1.bf16.msra.mxu0 %v318
    %384 = vmatprep.subr.bf16.mxu0 %v321
    %385 = vmatpush1.bf16.msra.mxu0 %v320
    %386 = vmatprep.subr.bf16.mxu0 %v323
    %387 = vmatpush1.bf16.msra.mxu0 %v322
    %388 = vmatprep.subr.bf16.mxu0 %v325
    %389 = vmatpush1.bf16.msra.mxu0 %v324
    %390 = vmatprep.subr.bf16.mxu0 %v327
    %391 = vmatpush1.bf16.msra.mxu0 %v326
    %392 = vmatprep.subr.bf16.mxu0 %v329
    %393 = vmatpush1.bf16.msra.mxu0 %v328
    %394 = vmatprep.subr.bf16.mxu0 %v331
    %395 = vmatpush1.bf16.msra.mxu0 %v330
    %396 = vmatprep.subr.bf16.mxu0 %v333
    %397 = vmatpush1.bf16.msra.mxu0 %v332
    %398 = vmatprep.subr.bf16.mxu0 %v335
    %399 = vmatpush1.bf16.msra.mxu0 %v334
    %400 = vmatprep.subr.bf16.mxu0 %v337
    %401 = vmatpush1.bf16.msra.mxu0 %v336
    %402 = vmatprep.subr.bf16.mxu0 %v339
    %403 = vmatpush1.bf16.msra.mxu0 %v338
    %404 = vmatprep.subr.bf16.mxu0 %v341
    %405 = vmatpush1.bf16.msra.mxu0 %v340
    %406 = vmatprep.subr.bf16.mxu0 %v343
    %407 = vmatpush1.bf16.msra.mxu0 %v342
    %408 = vmatprep.subr.bf16.mxu0 %v345
    %409 = vmatpush1.bf16.msra.mxu0 %v344
    %410 = vmatprep.subr.bf16.mxu0 %v347
    %411 = vmatpush1.bf16.msra.mxu0 %v346
    %412 = vmatprep.subr.bf16.mxu0 %v349
    %413 = vmatpush1.bf16.msra.mxu0 %v348
    %414 = vmatprep.mubr.bf16.mxu0 %v189
    %415 = vmatmul.mubr.bf16.gmra.mrb[0].mxu0 %v188
    %v416 = vpop.f32.mrb[0].mxu0
    %v417 = vadd.f32 0.0, %v416
    %v418 = vpop.f32.mrb[0].mxu0
    %v419 = vadd.f32 0.0, %v418
    %v420 = vpop.f32.mrb[0].mxu0
    %v421 = vadd.f32 0.0, %v420
    %v422 = vpop.f32.mrb[0].mxu0
    %v423 = vadd.f32 0.0, %v422
    %424 = vdwg.mxu0
    %v425 = vpack.c.bf16 %v421, %v417
    %v426 = vpack.c.bf16 %v423, %v419
    %v427 = vld [vmem:[%s4] sm:$0x3]
    %v430 = vunpack.c.l.s4 1966171168
    %v431 = vunpack.c.0.s8 %v430
    %v432 = vlaneseq
    %v433 = vshrl.u32 %v432, 7
    %v434 = vsub.s32 %v431, %v433
    %v435 = vrot.slane %v427, %v434
    %v436 = vcombine.high %v435, %v435
    %v438 = vunpack.c.l.s4 1966171168
    %v439 = vunpack.c.0.s8 %v438
    %v440 = vlaneseq
    %v441 = vshrl.u32 %v440, 7
    %v442 = vsub.s32 %v439, %v441
    %v443 = vrot.slane %v435, %v442
    %v445 = vunpack.c.l.s4 1966171168
    %v446 = vunpack.c.0.s8 %v445
    %v447 = vlaneseq
    %v448 = vshrl.u32 %v447, 7
    %v449 = vsub.s32 %v446, %v448
    %v450 = vrot.slane %v436, %v449
    %v452 = vpack.i.b16 %v443, %v443
    %v454 = vlaneseq
    %v455 = vshrl.u32 %v454, 7
    %v456 = vsub.s32 0, %v455
    %v457 = vrot.slane %v452, %v456
    %v459 = vpack.i.b16 %v450, %v450
    %v461 = vlaneseq
    %v462 = vshrl.u32 %v461, 7
    %v463 = vsub.s32 0, %v462
    %v464 = vrot.slane %v459, %v463
    %v465 = vadd.bf16 %v425, %v457
    %v466 = vadd.bf16 %v426, %v464
    %v467 = vmax.bf16 %v465, 0
    %v468 = vmax.bf16 %v466, 0
    %v469 = vld [vmem:[#allocation6] sm:$0xf]
    %v470 = vld [vmem:[#allocation6 + $0x4] sm:$0xf]
    %v471 = vld [vmem:[#allocation6 + $0x8] sm:$0xf]
    %v472 = vld [vmem:[#allocation6 + $0xc] sm:$0xf]
    %v473 = vld [vmem:[#allocation6 + $0x10] sm:$0xf]
    %v474 = vld [vmem:[#allocation6 + $0x14] sm:$0xf]
    %v475 = vld [vmem:[#allocation6 + $0x18] sm:$0xf]
    %v476 = vld [vmem:[#allocation6 + $0x1c] sm:$0xf]
    %v477 = vld [vmem:[#allocation6 + $0x20] sm:$0xf]
    %v478 = vld [vmem:[#allocation6 + $0x24] sm:$0xf]
    %v479 = vld [vmem:[#allocation6 + $0x28] sm:$0xf]
    %v480 = vld [vmem:[#allocation6 + $0x2c] sm:$0xf]
    %v481 = vld [vmem:[#allocation6 + $0x30] sm:$0xf]
    %v482 = vld [vmem:[#allocation6 + $0x34] sm:$0xf]
    %v483 = vld [vmem:[#allocation6 + $0x38] sm:$0xf]
    %v484 = vld [vmem:[#allocation6 + $0x3c] sm:$0xf]
    %v485 = vld [vmem:[#allocation6 + $0x40] sm:$0xf]
    %v486 = vld [vmem:[#allocation6 + $0x44] sm:$0xf]
    %v487 = vld [vmem:[#allocation6 + $0x48] sm:$0xf]
    %v488 = vld [vmem:[#allocation6 + $0x4c] sm:$0xf]
    %v489 = vld [vmem:[#allocation6 + $0x50] sm:$0xf]
    %v490 = vld [vmem:[#allocation6 + $0x54] sm:$0xf]
    %v491 = vld [vmem:[#allocation6 + $0x58] sm:$0xf]
    %v492 = vld [vmem:[#allocation6 + $0x5c] sm:$0xf]
    %v493 = vld [vmem:[#allocation6 + $0x60] sm:$0xf]
    %v494 = vld [vmem:[#allocation6 + $0x64] sm:$0xf]
    %v495 = vld [vmem:[#allocation6 + $0x68] sm:$0xf]
    %v496 = vld [vmem:[#allocation6 + $0x6c] sm:$0xf]
    %v497 = vld [vmem:[#allocation6 + $0x70] sm:$0xf]
    %v498 = vld [vmem:[#allocation6 + $0x74] sm:$0xf]
    %v499 = vld [vmem:[#allocation6 + $0x78] sm:$0xf]
    %v500 = vld [vmem:[#allocation6 + $0x7c] sm:$0xf]
    %v501 = vld [vmem:[%s6] sm:$0x1]
    %v503 = vlaneseq
    %v504 = vshrl.u32 %v503, 7
    %v505 = vsub.s32 0, %v504
    %v506 = vrot.slane %v501, %v505
    %v540 = vunpack.c.l.b16 %v469
    %v541 = vunpack.c.l.b16 %v470
    %v542 = vunpack.c.l.b16 %v471
    %v543 = vunpack.c.l.b16 %v472
    %v544 = vunpack.c.l.b16 %v473
    %v545 = vunpack.c.l.b16 %v474
    %v546 = vunpack.c.l.b16 %v475
    %v547 = vunpack.c.l.b16 %v476
    %v548 = vunpack.c.l.b16 %v477
    %v549 = vunpack.c.l.b16 %v478
    %v550 = vunpack.c.l.b16 %v479
    %v551 = vunpack.c.l.b16 %v480
    %v552 = vunpack.c.l.b16 %v481
    %v553 = vunpack.c.l.b16 %v482
    %v554 = vunpack.c.l.b16 %v483
    %v555 = vunpack.c.l.b16 %v484
    %v556 = vunpack.c.l.b16 %v485
    %v557 = vunpack.c.l.b16 %v486
    %v558 = vunpack.c.l.b16 %v487
    %v559 = vunpack.c.l.b16 %v488
    %v560 = vunpack.c.l.b16 %v489
    %v561 = vunpack.c.l.b16 %v490
    %v562 = vunpack.c.l.b16 %v491
    %v563 = vunpack.c.l.b16 %v492
    %v564 = vunpack.c.l.b16 %v493
    %v565 = vunpack.c.l.b16 %v494
    %v566 = vunpack.c.l.b16 %v495
    %v567 = vunpack.c.l.b16 %v496
    %v568 = vunpack.c.l.b16 %v497
    %v569 = vunpack.c.l.b16 %v498
    %v570 = vunpack.c.l.b16 %v499
    %v571 = vunpack.c.l.b16 %v500
    %v572 = vpack.c.b16 %v541, %v540
    %v573 = vpack.c.b16 %v543, %v542
    %v574 = vpack.c.b16 %v545, %v544
    %v575 = vpack.c.b16 %v547, %v546
    %v576 = vpack.c.b16 %v549, %v548
    %v577 = vpack.c.b16 %v551, %v550
    %v578 = vpack.c.b16 %v553, %v552
    %v579 = vpack.c.b16 %v555, %v554
    %v580 = vpack.c.b16 %v557, %v556
    %v581 = vpack.c.b16 %v559, %v558
    %v582 = vpack.c.b16 %v561, %v560
    %v583 = vpack.c.b16 %v563, %v562
    %v584 = vpack.c.b16 %v565, %v564
    %v585 = vpack.c.b16 %v567, %v566
    %v586 = vpack.c.b16 %v569, %v568
    %v587 = vpack.c.b16 %v571, %v570
    %604 = vmatprep.subr.bf16.mxu0 0
    %605 = vmatpush1.bf16.msra.mxu0 %v572
    %606 = vmatprep.subr.bf16.mxu0 0
    %607 = vmatpush1.bf16.msra.mxu0 %v573
    %608 = vmatprep.subr.bf16.mxu0 0
    %609 = vmatpush1.bf16.msra.mxu0 %v574
    %610 = vmatprep.subr.bf16.mxu0 0
    %611 = vmatpush1.bf16.msra.mxu0 %v575
    %612 = vmatprep.subr.bf16.mxu0 0
    %613 = vmatpush1.bf16.msra.mxu0 %v576
    %614 = vmatprep.subr.bf16.mxu0 0
    %615 = vmatpush1.bf16.msra.mxu0 %v577
    %616 = vmatprep.subr.bf16.mxu0 0
    %617 = vmatpush1.bf16.msra.mxu0 %v578
    %618 = vmatprep.subr.bf16.mxu0 0
    %619 = vmatpush1.bf16.msra.mxu0 %v579
    %620 = vmatprep.subr.bf16.mxu0 0
    %621 = vmatpush1.bf16.msra.mxu0 %v580
    %622 = vmatprep.subr.bf16.mxu0 0
    %623 = vmatpush1.bf16.msra.mxu0 %v581
    %624 = vmatprep.subr.bf16.mxu0 0
    %625 = vmatpush1.bf16.msra.mxu0 %v582
    %626 = vmatprep.subr.bf16.mxu0 0
    %627 = vmatpush1.bf16.msra.mxu0 %v583
    %628 = vmatprep.subr.bf16.mxu0 0
    %629 = vmatpush1.bf16.msra.mxu0 %v584
    %630 = vmatprep.subr.bf16.mxu0 0
    %631 = vmatpush1.bf16.msra.mxu0 %v585
    %632 = vmatprep.subr.bf16.mxu0 0
    %633 = vmatpush1.bf16.msra.mxu0 %v586
    %634 = vmatprep.subr.bf16.mxu0 0
    %635 = vmatpush1.bf16.msra.mxu0 %v587
    %636 = vmatprep.mubr.bf16.mxu0 %v468
    %637 = vmatmul.mubr.bf16.gmra.mrb[0].mxu0 %v467
    %v638 = vpop.f32.mrb[0].mxu0
    %v639 = vadd.f32 %v506, %v638
    %v640 = vpop.f32.mrb[0].mxu0
    %v641 = vpop.f32.mrb[0].mxu0
    %v642 = vadd.f32 %v506, %v641
    %v643 = vpop.f32.mrb[0].mxu0
    %644 = vdwg.mxu0
    %645 = vst [vmem:[%s7] sm:$0xff] %v639
    %646 = vst [vmem:[%s7 + $0x8] sm:$0xff] %v642
    // Predicated region
    $region42: #{dqn_forward.1} parent=1 // pred_check
      _
    $region43: #{dqn_forward.1} parent=1 // pred_check_branch
      %648 = sbr.rel (0) target = $region45
    $region44: #{dqn_forward.1} parent=1 // pred_region
      _
    $region45: #{dqn_forward.1} parent=1 // pred_fallthru
      _
    // Predicated region
    $region46: #{dqn_forward.1} parent=1 // pred_check
      _
    $region47: #{dqn_forward.1} parent=1 // pred_check_branch
      %650 = sbr.rel (0) target = $region49
    $region48: #{dqn_forward.1} parent=1 // pred_region
      _
    $region49: #{dqn_forward.1} parent=1 // pred_fallthru
      _
    %651 = vsyncpa [#allocation3], 1
    %652 = vsyncpa [#allocation5], 1

</llo_original>
